<compile_context>
chip_gen: v6e
topology: v6e:2x2x1
jax: 0.10.0
libtpu: 0.0.40
codegen_flags: <defaults>
</compile_context>

<pallas_src>
import jax
import jax.numpy as jnp
from jax.experimental import pallas as pl
from jax.experimental.pallas import tpu as pltpu


def _round_up(v, m):
    return (v + m - 1) // m * m


def _identity_copy_kernel(x_ref, o_ref):
    # backbone == Identity; GradReverse.forward == identity.
    o_ref[...] = x_ref[...]


def _feats_pallas_impl(x):
    """Identity pass over (N, F) features, tiled and pipelined on TPU."""
    n, f = x.shape
    itemsize = jnp.dtype(x.dtype).itemsize

    # Sublane packing: 8 rows for 32-bit, 16 for 16-bit, 32 for 8-bit dtypes.
    sub = max(8, 32 // itemsize)

    # ~4 MiB per block; with double buffering of input + output that is ~16 MiB of
    # VMEM, safely under the 32 MiB limit we request below on every generation.
    block_budget = 4 * 1024 * 1024

    # Lane tiling: keep the full (lane-dense) F extent unless even a `sub`-row
    # full-F block would blow the budget; then chunk F in multiples of 128 lanes.
    tf = f
    if sub * f * itemsize > block_budget:
        tf = max(128, (block_budget // (sub * itemsize)) // 128 * 128)

    # Row tiling from the remaining budget, sublane-aligned.
    if n <= sub:
        tm = n  # block dim == full array dim satisfies the (8,128) rule
    else:
        rows = max(sub, block_budget // max(1, tf * itemsize))
        tm = max(sub, (rows // sub) * sub)
        tm = min(tm, _round_up(n, sub))

    grid = (pl.cdiv(n, tm), pl.cdiv(f, tf))

    return pl.pallas_call(
        _identity_copy_kernel,
        out_shape=jax.ShapeDtypeStruct((n, f), x.dtype),
        grid_spec=pl.GridSpec(
            grid=grid,
            in_specs=[pl.BlockSpec((tm, tf), lambda i, j: (i, j))],
            out_specs=pl.BlockSpec((tm, tf), lambda i, j: (i, j)),
        ),
        compiler_params=pltpu.CompilerParams(
            dimension_semantics=("parallel", "parallel"),
            vmem_limit_bytes=32 * 1024 * 1024,
        ),
        cost_estimate=pl.CostEstimate(
            flops=0, transcendentals=0, bytes_accessed=2 * n * f * itemsize
        ),
    )(x)


# Wrap the Pallas copy in a custom_vjp (bwd = identity) so autodiff never applies
# JVP/transpose rules to the pallas_call itself.
@jax.custom_vjp
def _identity_copy(x):
    return _feats_pallas_impl(x)


def _identity_copy_fwd(x):
    return _feats_pallas_impl(x), None


def _identity_copy_bwd(_, g):
    return (g,)


_identity_copy.defvjp(_identity_copy_fwd, _identity_copy_bwd)


# GradReverse: forward identity, backward grad * (-alpha) (alpha gets no grad).
@jax.custom_vjp
def _grad_reverse(x, alpha):
    return x


def _grad_reverse_fwd(x, alpha):
    return x, alpha


def _grad_reverse_bwd(alpha, g):
    return (-alpha * g, jnp.zeros_like(alpha))


_grad_reverse.defvjp(_grad_reverse_fwd, _grad_reverse_bwd)


def dann_forward(x, source_size, alpha):
    """Mirror of Network.forward(x, source_size, alpha).

    Args:
      x: (N, C, H, W) array (NCHW, like PyTorch).
      source_size: python int; number of leading source-domain samples.
      alpha: gradient-reversal coefficient (forward is identity; backward = -alpha*g).
    Returns:
      (feats, logits, dom) with
        feats : (N, C*H*W)
        logits: (source_size, C*H*W) or None if source_size <= 0
        dom   : feats (through GradReverse) with size-1 dims squeezed (torch .squeeze()).
    """
    n = x.shape[0]
    f = 1
    for d in x.shape[1:]:
        f *= d
    feats_in = x.reshape(n, f)  # row-major flatten == torch .view(N, -1)

    feats = _identity_copy(feats_in)

    if source_size > 0:
        logits = feats[:source_size]  # classifier == Identity on the leading slice
    else:
        logits = None

    alpha_arr = jnp.asarray(alpha, dtype=feats.dtype)
    # domain_classifier == Identity; torch .squeeze() drops ALL size-1 dims
    # (note: for N==1 this changes the rank — same hazard as the PyTorch original).
    dom = jnp.squeeze(_grad_reverse(feats, alpha_arr))
    return feats, logits, dom


if __name__ == "__main__":
    key = jax.random.PRNGKey(0)
    # Small shapes consistent with the module's NCHW conv-feature input.
    N, C, H, W = 2, 4, 16, 16
    x = jax.random.normal(key, (N, C, H, W), dtype=jnp.float32)
    source_size = 1
    alpha = 0.5

    feats, logits, dom = dann_forward(x, source_size, alpha)
    jax.block_until_ready(feats)
    if logits is not None:
        jax.block_until_ready(logits)
    jax.block_until_ready(dom)

    # Correctness check against the pure-JAX reference semantics.
    feats_ref = x.reshape(N, -1)
    assert feats.shape == (N, C * H * W)
    assert logits.shape == (source_size, C * H * W)
    assert dom.shape == feats_ref.squeeze().shape
    assert jnp.allclose(feats, feats_ref)
    assert jnp.allclose(logits, feats_ref[:source_size])
    assert jnp.allclose(dom, feats_ref.squeeze())

    # Backward-semantics check for GradReverse: d(sum(dom))/dx == -alpha.
    g = jax.grad(lambda xx: jnp.sum(dann_forward(xx, source_size, alpha)[2]))(x)
    jax.block_until_ready(g)
    assert jnp.allclose(g, jnp.full_like(x, -alpha))

    print("KERNEL_OK")
</pallas_src>

<mosaic_0001>
module attributes {stable_mosaic.version = 11 : i64} {
  func.func @_identity_copy_kernel(%arg0: i32, %arg1: i32, %arg2: memref<2x1024xf32, #tpu.memory_space<vmem>>, %arg3: memref<2x1024xf32, #tpu.memory_space<vmem>>) attributes {dimension_semantics = [#tpu.dimension_semantics<parallel>, #tpu.dimension_semantics<parallel>], iteration_bounds = array<i64: 1, 1>, scalar_prefetch = 0 : i64, scratch_operands = 0 : i64, tpu.core_type = #tpu.core_type<tc>, window_params = [{transform_indices = @transform_0, window_bounds = array<i64: 2, 1024>}, {transform_indices = @transform_1, window_bounds = array<i64: 2, 1024>}]} {
    %c0 = arith.constant 0 : index
    %c0_0 = arith.constant 0 : index
    %0 = vector.load %arg2[%c0, %c0_0] : memref<2x1024xf32, #tpu.memory_space<vmem>>, vector<2x1024xf32>
    %c0_1 = arith.constant 0 : index
    %c0_2 = arith.constant 0 : index
    %1 = vector.load %arg3[%c0_1, %c0_2] : memref<2x1024xf32, #tpu.memory_space<vmem>>, vector<2x1024xf32>
    tpu.vector_store %arg3[%c0_1, %c0_2], %0 {strides = array<i32>} : memref<2x1024xf32, #tpu.memory_space<vmem>>, vector<2x1024xf32>,
    return
  }
  func.func @transform_0(%arg0: i32, %arg1: i32) -> (i32, i32) {
    %c0_i32 = arith.constant 0 : i32
    return %arg0, %arg1 : i32, i32
  }
  func.func @transform_1(%arg0: i32, %arg1: i32) -> (i32, i32) {
    %c0_i32 = arith.constant 0 : i32
    return %arg0, %arg1 : i32, i32
  }
}

</mosaic_0001>

<llo_original>
// kernel: tpu_custom_call.1
$region0: #{tpu_custom_call.1}
  #allocation0 [shape = 'u32[]', space=smem, size = 0x4, offset = 0x4, fixed_abs, tag = 'smem constant byte address 0x4 - core index']
  #allocation1 [shape = 'u32[144,128]{1,0:T(1,128)}', space=vmem, size = 0x12000, scoped, tag = 'internal scratch']
  %s0 = inlined_call_operand.hbm [shape: f32[2,1024], index: 0, kind: input, shape index: {}]
  %s1 = inlined_call_operand.hbm [shape: f32[2,1024], index: 1, kind: output, shape index: {}]
  %s2 = sld [smem:[#allocation0]]
  $region18: #{tpu_custom_call.1} parent=0
    _
  %s4 = ssub.s32 1, %s2
  %s5 = scalar_select 0, %s4, %s2
  $region1: #{tpu_custom_call.1} parent=0
    #allocation2 [shape = 'u8[8192]{0}', space=vmem, size = 0x2000, scoped, tag = 'input window, operand 0, single buffered']
    #allocation3 [shape = 's32[1]{0}', space=sflag, size = 0x4, scoped, tag = 'scoped memory for tpu_custom_call.1']
    #allocation4 [shape = 's32[1]{0}', space=sflag, size = 0x4, scoped, tag = 'scoped memory for tpu_custom_call.1']
    #allocation5 [shape = 'u8[8192]{0}', space=vmem, size = 0x2000, scoped, tag = 'output window, operand 0, single buffered']
    %6 = vsyncpa [#allocation3], 0
    %7 = vsyncpa [#allocation4], 0
    // Predicated region
    $region2: #{tpu_custom_call.1} parent=1 // pred_check
      _
    $region3: #{tpu_custom_call.1} parent=1 // pred_check_branch
      %9 = sbr.rel (0) target = $region5
    $region4: #{tpu_custom_call.1} parent=1 // pred_region
      %s11 = ssub.s32 256, 256
      %12 = vsyncadd [#allocation3], %s11
      %s14 = sshll.u32 [#allocation2], 4
      %s15 = int_to_ptr.vmem [resolvable:$true] %s14
      %17 = dma.hbm_to_vmem [thread:$0]  %s0, 256, %s15, [#allocation3]
    $region5: #{tpu_custom_call.1} parent=1 // pred_fallthru
      _
    // Predicated region
    $region6: #{tpu_custom_call.1} parent=1 // pred_check
      _
    $region7: #{tpu_custom_call.1} parent=1 // pred_check_branch
      %19 = sbr.rel (0) target = $region9
    $region8: #{tpu_custom_call.1} parent=1 // pred_region
      %20 = dma.done [#allocation3], 256
    $region9: #{tpu_custom_call.1} parent=1 // pred_fallthru
      _
    %v21 = vld [vmem:[#allocation2] sm:$0xff]
    %v22 = vld [vmem:[#allocation2 + $0x8] sm:$0xff]
    %23 = vst [vmem:[#allocation5] sm:$0xff] %v21
    %24 = vst [vmem:[#allocation5 + $0x8] sm:$0xff] %v22
    // Predicated region
    $region10: #{tpu_custom_call.1} parent=1 // pred_check
      _
    $region11: #{tpu_custom_call.1} parent=1 // pred_check_branch
      %26 = sbr.rel (0) target = $region13
    $region12: #{tpu_custom_call.1} parent=1 // pred_region
      %s28 = ssub.s32 256, 256
      %29 = vsyncadd [#allocation4], %s28
      %s31 = sshll.u32 [#allocation5], 4
      %s32 = int_to_ptr.vmem [resolvable:$true] %s31
      %34 = dma.vmem_to_hbm [thread:$0]  %s32, 256, %s1, [#allocation4]
    $region13: #{tpu_custom_call.1} parent=1 // pred_fallthru
      _
    // Predicated region
    $region14: #{tpu_custom_call.1} parent=1 // pred_check
      _
    $region15: #{tpu_custom_call.1} parent=1 // pred_check_branch
      %36 = sbr.rel (0) target = $region17
    $region16: #{tpu_custom_call.1} parent=1 // pred_region
      %37 = dma.done [#allocation4], 256
    $region17: #{tpu_custom_call.1} parent=1 // pred_fallthru
      _
    %38 = vsyncpa [#allocation3], 1
    %39 = vsyncpa [#allocation4], 1

</llo_original>
